<compile_context>
chip_gen: v7x
topology: tpu7x:2x2x1
jax: 0.10.0
libtpu: 0.0.40
codegen_flags: <defaults>
</compile_context>

<pallas_src>
import functools

import jax
import jax.numpy as jnp
import numpy as np
from jax import lax
from jax.experimental import pallas as pl
from jax.experimental.pallas import tpu as pltpu

K_PAD = 128                       # lane-dense padded number of selected columns
TARGET_TILE_BYTES = 4 << 20       # ~4 MiB of gathered rows per grid step
FUSED_TILE_CAP = 512              # bound outstanding per-row DMAs (fused path)
PREGATHER_TILE_CAP = 1024         # bigger tiles when rows come pre-gathered
GATHER_FUSE_MIN_ROW_BYTES = 2048  # below this, per-row DMAs are issue-bound


def _sublane_multiple(itemsize: int) -> int:
    return {4: 8, 2: 16, 1: 32}.get(int(itemsize), 8)


def _activate_selected(x, w, num_valid: int):
    """One-hot column gather on the MXU + f32 softmax/sigmoid over K columns."""
    sel = jnp.dot(x, w, preferred_element_type=jnp.float32)   # [rows, K_PAD]
    col = lax.broadcasted_iota(jnp.int32, sel.shape, 1)
    if num_valid < 2:
        # PoolerClassify: num_labels < 2 -> sigmoid.
        sig = pl.reciprocal(1.0 + jnp.exp(-sel))
        return jnp.where(col < num_valid, sig, 0.0)
    sel = jnp.where(col < num_valid, sel, -jnp.inf)
    m = jnp.max(sel, axis=-1, keepdims=True)
    p = jnp.exp(sel - m)                          # padded lanes: exp(-inf) == 0
    denom = jnp.sum(p, axis=-1, keepdims=True)
    return p * pl.reciprocal(denom)               # exact reciprocal (1e-5 tol)


# --------------------------------------------------------------------------
# Kernel A: fused in-kernel row gather (scalar-prefetched indices, HBM input,
# double-buffered VMEM scratch, per-row async DMAs).
# --------------------------------------------------------------------------
def _fused_gather_kernel(idx_ref, hs_ref, w_ref, o_ref, x_buf, copy_sem, *,
                         tile_t: int, num_valid: int):
    """idx_ref : SMEM [r_pad] int32     kept-row indices (scalar prefetch)
       hs_ref  : HBM  [T, H]            hidden states (memory_space=ANY)
       w_ref   : VMEM [H, K_PAD]        one-hot column selector
       o_ref   : VMEM [tile_t, K_PAD]   probabilities (f32)
       x_buf   : VMEM [2, tile_t, H]    double-buffered gathered rows
       copy_sem: DMA semaphores [2]
    """
    i = pl.program_id(0)
    n = pl.num_programs(0)
    slot = i % 2

    def issue(tile_idx, dst_slot):
        base = tile_idx * tile_t

        def body(r, carry):
            row = idx_ref[base + r]
            pltpu.make_async_copy(
                hs_ref.at[pl.ds(row, 1), :],
                x_buf.at[dst_slot, pl.ds(r, 1), :],
                copy_sem.at[dst_slot],
            ).start()
            return carry

        lax.fori_loop(0, tile_t, body, 0)

    def wait(dst_slot):
        def body(r, carry):
            # Same-shaped descriptor per issued copy; one wait per row DMA.
            pltpu.make_async_copy(
                hs_ref.at[pl.ds(0, 1), :],
                x_buf.at[dst_slot, pl.ds(0, 1), :],
                copy_sem.at[dst_slot],
            ).wait()
            return carry

        lax.fori_loop(0, tile_t, body, 0)

    @pl.when(i == 0)
    def _():                          # prime the pipeline
        issue(0, 0)

    @pl.when(i + 1 < n)
    def _():                          # prefetch next tile while computing this one
        issue(i + 1, 1 - slot)

    wait(slot)
    o_ref[...] = _activate_selected(x_buf[slot], w_ref[...], num_valid)


# --------------------------------------------------------------------------
# Kernel B: rows pre-gathered by XLA (small rows, per-row DMA not worthwhile).
# --------------------------------------------------------------------------
def _pregathered_kernel(x_ref, w_ref, o_ref, *, num_valid: int):
    o_ref[...] = _activate_selected(x_ref[...], w_ref[...], num_valid)


# --------------------------------------------------------------------------
# Host-side helpers: tiling, bucketing, caching.
# --------------------------------------------------------------------------
def _vmem_capacity_bytes() -> int:
    try:
        info = pltpu.get_tpu_info()
        cap = int(getattr(info, "vmem_capacity_bytes", 0) or 0)
        if cap > 0:
            return cap
    except Exception:
        pass
    return 64 << 20   # v7x per-core VMEM: safe lower bound across generations


def _bucket_count(t: int) -> int:
    """Round a tile count up onto a coarse {1, 1.25, 1.5} x 2^k series."""
    c = 1
    while c < t:
        if c % 4 == 0 and (c * 5) // 4 >= t:
            return (c * 5) // 4
        if c % 2 == 0 and (c * 3) // 2 >= t:
            return (c * 3) // 2
        c *= 2
    return c


def _choose_tiling(total_kept: int, row_bytes: int, sub: int, max_tile: int):
    """Pick (tile_t, r_pad). tile_t depends only on (H, dtype) for large
    inputs; small inputs use a pow2-of-sublane bucket -> few compile shapes."""
    base_tile = (TARGET_TILE_BYTES // max(1, row_bytes)) // sub * sub
    base_tile = int(max(sub, min(max_tile, base_tile)))
    if total_kept <= base_tile:
        t = sub
        while t < total_kept and t * 2 <= base_tile:
            t *= 2
        if t < total_kept:
            t = base_tile
        return t, t
    n_tiles = _bucket_count(-(-total_kept // base_tile))
    return base_tile, base_tile * n_tiles


@functools.lru_cache(maxsize=32)
def _selector(returned_token_ids: tuple, H: int, dtype):
    """One-hot [H, K_PAD] column selector, cached (static per model)."""
    K = len(returned_token_ids)
    ids = jnp.asarray(returned_token_ids, jnp.int32)
    w = jnp.zeros((H, K_PAD), dtype)
    return w.at[ids, jnp.arange(K)].set(1)


@functools.lru_cache(maxsize=128)
def _build_pooler(T: int, H: int, dtype, r_pad: int, tile_t: int, K: int,
                  fused: bool):
    itemsize = np.dtype(dtype).itemsize
    num_tiles = r_pad // tile_t

    vmem_need = (2 * tile_t * H * itemsize       # gathered-row tiles (x2 buf)
                 + 2 * H * K_PAD * itemsize      # selector (double-buffered)
                 + 2 * tile_t * K_PAD * 4        # f32 output tiles (x2 buf)
                 + (1 << 20))
    ceiling = max(_vmem_capacity_bytes() - (16 << 20), 24 << 20)
    vmem_limit = int(min(max(32 << 20, vmem_need + (4 << 20)), ceiling))

    if fused:
        kernel = functools.partial(
            _fused_gather_kernel, tile_t=tile_t, num_valid=K)
        call = pl.pallas_call(
            kernel,
            out_shape=jax.ShapeDtypeStruct((r_pad, K_PAD), jnp.float32),
            grid_spec=pltpu.PrefetchScalarGridSpec(
                num_scalar_prefetch=1,
                grid=(num_tiles,),
                in_specs=[
                    pl.BlockSpec(memory_space=pl.ANY),                # hs (HBM)
                    pl.BlockSpec((H, K_PAD), lambda i, idx: (0, 0)),  # selector
                ],
                out_specs=pl.BlockSpec((tile_t, K_PAD), lambda i, idx: (i, 0)),
                scratch_shapes=[
                    pltpu.VMEM((2, tile_t, H), dtype),
                    pltpu.SemaphoreType.DMA((2,)),
                ],
            ),
            compiler_params=pltpu.CompilerParams(
                # Scratch double-buffer carries across steps -> arbitrary.
                # TODO(synk): split the row stream across v7x's two TensorCores
                # (CORE_PARALLEL / core_map with per-core scratch).
                dimension_semantics=("arbitrary",),
                vmem_limit_bytes=vmem_limit),
        )

        def run(keep_idx, hidden_states, w):
            return call(keep_idx, hidden_states, w)
    else:
        kernel = functools.partial(_pregathered_kernel, num_valid=K)
        call = pl.pallas_call(
            kernel,
            out_shape=jax.ShapeDtypeStruct((r_pad, K_PAD), jnp.float32),
            grid=(num_tiles,),
            in_specs=[
                pl.BlockSpec((tile_t, H), lambda i: (i, 0)),
                pl.BlockSpec((H, K_PAD), lambda i: (0, 0)),
            ],
            out_specs=pl.BlockSpec((tile_t, K_PAD), lambda i: (i, 0)),
            compiler_params=pltpu.CompilerParams(
                dimension_semantics=("parallel",),
                vmem_limit_bytes=vmem_limit),
        )

        def run(keep_idx, hidden_states, w):
            x_rows = jnp.take(hidden_states, keep_idx, axis=0)
            return call(x_rows, w)

    def outer(keep_idx, hidden_states, w):
        probs = run(keep_idx, hidden_states, w)         # [r_pad, K_PAD] f32
        return lax.slice(probs, (0, 0), (r_pad, K))     # device-side col slice

    return jax.jit(outer)


# --------------------------------------------------------------------------
# Public forward pass (StepPooler.forward).
# --------------------------------------------------------------------------
def step_pooler_forward(hidden_states, prompt_lens, prompt_token_ids_list, *,
                        returned_token_ids, step_tag_id):
    """Returns a list (one numpy array per sequence) of [num_step_tokens_i, K]
    float32 probabilities (softmax over the K selected columns)."""
    hidden_states = jnp.asarray(hidden_states)
    T, H = hidden_states.shape
    # TODO(synk): returned_token_ids=None/[] (keep all H columns, softmax over
    # the full hidden dim) is a different kernel shape and is not implemented.
    assert returned_token_ids is not None and len(returned_token_ids) > 0
    K = len(returned_token_ids)
    assert K <= K_PAD

    # Host-side step-tag row selection: data-dependent, ragged output shapes.
    keep_per_seq, offset = [], 0
    for L, tok_ids in zip(prompt_lens, prompt_token_ids_list):
        L = int(L)
        if step_tag_id is None:
            keep = np.arange(L, dtype=np.int64)
        else:
            keep = np.nonzero(np.asarray(tok_ids) == step_tag_id)[0]
        keep_per_seq.append(keep + offset)
        offset += L
    counts = [len(k) for k in keep_per_seq]
    total_kept = int(sum(counts))
    if total_kept == 0:
        return [np.zeros((0, K), np.float32) for _ in counts]

    dtype = hidden_states.dtype
    itemsize = np.dtype(dtype).itemsize
    row_bytes = H * itemsize
    fused = row_bytes >= GATHER_FUSE_MIN_ROW_BYTES
    sub = _sublane_multiple(itemsize)
    max_tile = FUSED_TILE_CAP if fused else PREGATHER_TILE_CAP
    tile_t, r_pad = _choose_tiling(total_kept, row_bytes, sub, max_tile)

    keep_idx_pad = np.zeros((r_pad,), np.int32)   # pad with row 0 (discarded)
    keep_idx_pad[:total_kept] = np.concatenate(keep_per_seq)

    w = _selector(tuple(int(t) for t in returned_token_ids), int(H), dtype)
    run = _build_pooler(int(T), int(H), dtype, int(r_pad), int(tile_t), int(K),
                        bool(fused))

    probs = run(jnp.asarray(keep_idx_pad), hidden_states, w)   # [r_pad, K] f32
    probs_host = np.asarray(jax.block_until_ready(probs))      # small host copy

    results, off = [], 0
    for n in counts:
        results.append(probs_host[off:off + n, :])
        off += n
    return results


# --------------------------------------------------------------------------
# Reference + self-test.
# --------------------------------------------------------------------------
def _reference(hidden_states, prompt_lens, prompt_token_ids_list,
               returned_token_ids, step_tag_id):
    """Pure-numpy reference matching the PyTorch StepPooler semantics."""
    hs = np.asarray(hidden_states)
    results, offset = [], 0
    for L, tok_ids in zip(prompt_lens, prompt_token_ids_list):
        L = int(L)
        data = hs[offset:offset + L][:, returned_token_ids]      # col select
        if step_tag_id is not None:
            data = data[np.asarray(tok_ids) == step_tag_id]      # row select
        data = data.astype(np.float32)
        if data.size:
            if data.shape[-1] < 2:
                data = 1.0 / (1.0 + np.exp(-data))
            else:
                m = data.max(axis=-1, keepdims=True)
                e = np.exp(data - m)
                data = e / e.sum(axis=-1, keepdims=True)
        results.append(data)
        offset += L
    return results


if __name__ == "__main__":
    key = jax.random.PRNGKey(0)

    def run_case(H):
        k1, k2 = jax.random.split(jax.random.fold_in(key, H))
        prompt_lens = [6, 10, 5]
        T = sum(prompt_lens)
        returned_token_ids = [3, 7]
        step_tag_id = 5

        hidden_states = jax.random.normal(k1, (T, H), dtype=jnp.float32)

        # Deterministic prompt token ids in [0, 4) so the only step tags are
        # the planted ones; third sequence has none (empty-output path).
        tok_all = np.array(jax.random.randint(k2, (T,), 0, 4, dtype=jnp.int32))
        tok_all[2] = step_tag_id
        tok_all[5] = step_tag_id
        tok_all[9] = step_tag_id
        tok_all[15] = step_tag_id
        prompt_token_ids_list = [tok_all[:6], tok_all[6:16], tok_all[16:21]]

        out = step_pooler_forward(
            hidden_states, prompt_lens, prompt_token_ids_list,
            returned_token_ids=returned_token_ids, step_tag_id=step_tag_id)
        ref = _reference(hidden_states, prompt_lens, prompt_token_ids_list,
                         returned_token_ids, step_tag_id)
        for got, exp in zip(out, ref):
            assert got.shape == exp.shape, (H, got.shape, exp.shape)
            if exp.size:
                np.testing.assert_allclose(got, exp, rtol=1e-5, atol=1e-5)

    run_case(512)   # 2 KiB rows -> fused in-kernel DMA-gather path
    run_case(128)   # small rows -> pre-gathered (XLA take) path

    print("KERNEL_OK")
</pallas_src>

<mosaic_0001>
module attributes {stable_mosaic.version = 11 : i64} {
  func.func @_fused_gather_kernel(%arg0: i32, %arg1: memref<8xi32, #tpu.memory_space<smem>>, %arg2: memref<21x512xf32, #tpu.memory_space<any>>, %arg3: memref<512x128xf32, #tpu.memory_space<vmem>>, %arg4: memref<8x128xf32, #tpu.memory_space<vmem>>, %arg5: memref<2x8x512xf32, #tpu.memory_space<vmem>>, %arg6: memref<2x!tpu.dma_semaphore, #tpu.memory_space<semaphore_mem>>) attributes {dimension_semantics = [#tpu.dimension_semantics<arbitrary>], iteration_bounds = array<i64: 1>, scalar_prefetch = 1 : i64, scratch_operands = 2 : i64, tpu.core_type = #tpu.core_type<tc>, window_params = [{}, {pipeline_mode = #tpu.pipeline_mode<synchronous>, transform_indices = @transform_1, window_bounds = array<i64: 512, 128>}, {transform_indices = @transform_2, window_bounds = array<i64: 8, 128>}]} {
    %c2_i32 = arith.constant 2 : i32
    %c0_i32 = arith.constant 0 : i32
    %0 = arith.cmpi eq, %c2_i32, %c0_i32 : i32
    %c1_i32 = arith.constant 1 : i32
    %1 = arith.select %0, %c1_i32, %c2_i32 : i32
    %2 = arith.remsi %arg0, %1 : i32
    %c0_i32_0 = arith.constant 0 : i32
    %3 = arith.cmpi ne, %2, %c0_i32_0 : i32
    %c0_i32_1 = arith.constant 0 : i32
    %4 = arith.cmpi slt, %2, %c0_i32_1 : i32
    %c0_i32_2 = arith.constant 0 : i32
    %5 = arith.cmpi slt, %1, %c0_i32_2 : i32
    %6 = arith.xori %4, %5 : i1
    %7 = arith.andi %6, %3 : i1
    %8 = arith.addi %2, %1 : i32
    %9 = arith.select %7, %8, %2 : i32
    %c0_i32_3 = arith.constant 0 : i32
    %10 = arith.cmpi eq, %arg0, %c0_i32_3 : i32
    %11 = arith.extui %10 : i1 to i32
    %c0_i32_4 = arith.constant 0 : i32
    %12 = arith.cmpi ne, %11, %c0_i32_4 : i32
    scf.if %12 {
      %c0_i32_19 = arith.constant 0 : i32
      %c8_i32_20 = arith.constant 8 : i32
      %39 = arith.addi %c0_i32_19, %c8_i32_20 : i32
      %c1_i32_21 = arith.constant 1 : i32
      scf.for %arg7 = %c0_i32_19 to %39 step %c1_i32_21  : i32 {
        %c0_i32_23 = arith.constant 0 : i32
        %40 = arith.addi %c0_i32_23, %arg7 : i32
        %41 = arith.index_cast %40 : i32 to index
        %42 = memref.load %arg1[%41] : memref<8xi32, #tpu.memory_space<smem>>
        %c0_i32_24 = arith.constant 0 : i32
        %c0_i32_25 = arith.constant 0 : i32
        %c0_i32_26 = arith.constant 0 : i32
        %43 = tpu.memref_slice %arg2[%42, %c0_i32_26] : memref<21x512xf32, #tpu.memory_space<any>> -> memref<1x512xf32, #tpu.memory_space<any>>
        %c0_i32_27 = arith.constant 0 : i32
        %44 = tpu.memref_slice %arg5[%c0_i32_24, %arg7, %c0_i32_27] : memref<2x8x512xf32, #tpu.memory_space<vmem>> -> memref<1x1x512xf32, #tpu.memory_space<vmem>>
        %45 = tpu.memref_squeeze %44 : memref<1x1x512xf32, #tpu.memory_space<vmem>> -> memref<1x512xf32, #tpu.memory_space<vmem>>
        %46 = tpu.memref_slice %arg6[%c0_i32_25] : memref<2x!tpu.dma_semaphore, #tpu.memory_space<semaphore_mem>> -> memref<1x!tpu.dma_semaphore, #tpu.memory_space<semaphore_mem>>
        %47 = tpu.memref_squeeze %46 : memref<1x!tpu.dma_semaphore, #tpu.memory_space<semaphore_mem>> -> memref<!tpu.dma_semaphore, #tpu.memory_space<semaphore_mem>>
        tpu.enqueue_dma source(%43 : memref<1x512xf32, #tpu.memory_space<any>>) target(%45 : memref<1x512xf32, #tpu.memory_space<vmem>>) target_semaphore(%47 : memref<!tpu.dma_semaphore, #tpu.memory_space<semaphore_mem>>)
      }
      %c8_i32_22 = arith.constant 8 : i32
    } else {
    }
    %c1_i32_5 = arith.constant 1 : i32
    %13 = arith.addi %arg0, %c1_i32_5 : i32
    %c1_i32_6 = arith.constant 1 : i32
    %14 = arith.cmpi slt, %13, %c1_i32_6 : i32
    %15 = arith.extui %14 : i1 to i32
    %c0_i32_7 = arith.constant 0 : i32
    %16 = arith.cmpi ne, %15, %c0_i32_7 : i32
    scf.if %16 {
      %c1_i32_19 = arith.constant 1 : i32
      %39 = arith.addi %arg0, %c1_i32_19 : i32
      %c1_i32_20 = arith.constant 1 : i32
      %40 = arith.subi %c1_i32_20, %9 : i32
      %c8_i32_21 = arith.constant 8 : i32
      %41 = arith.muli %39, %c8_i32_21 : i32
      %c0_i32_22 = arith.constant 0 : i32
      %c8_i32_23 = arith.constant 8 : i32
      %42 = arith.addi %c0_i32_22, %c8_i32_23 : i32
      %c1_i32_24 = arith.constant 1 : i32
      scf.for %arg7 = %c0_i32_22 to %42 step %c1_i32_24  : i32 {
        %43 = arith.addi %41, %arg7 : i32
        %44 = arith.index_cast %43 : i32 to index
        %45 = memref.load %arg1[%44] : memref<8xi32, #tpu.memory_space<smem>>
        %c0_i32_26 = arith.constant 0 : i32
        %46 = tpu.memref_slice %arg2[%45, %c0_i32_26] : memref<21x512xf32, #tpu.memory_space<any>> -> memref<1x512xf32, #tpu.memory_space<any>>
        %c0_i32_27 = arith.constant 0 : i32
        %47 = tpu.memref_slice %arg5[%40, %arg7, %c0_i32_27] : memref<2x8x512xf32, #tpu.memory_space<vmem>> -> memref<1x1x512xf32, #tpu.memory_space<vmem>>
        %48 = tpu.memref_squeeze %47 : memref<1x1x512xf32, #tpu.memory_space<vmem>> -> memref<1x512xf32, #tpu.memory_space<vmem>>
        %49 = tpu.memref_slice %arg6[%40] : memref<2x!tpu.dma_semaphore, #tpu.memory_space<semaphore_mem>> -> memref<1x!tpu.dma_semaphore, #tpu.memory_space<semaphore_mem>>
        %50 = tpu.memref_squeeze %49 : memref<1x!tpu.dma_semaphore, #tpu.memory_space<semaphore_mem>> -> memref<!tpu.dma_semaphore, #tpu.memory_space<semaphore_mem>>
        tpu.enqueue_dma source(%46 : memref<1x512xf32, #tpu.memory_space<any>>) target(%48 : memref<1x512xf32, #tpu.memory_space<vmem>>) target_semaphore(%50 : memref<!tpu.dma_semaphore, #tpu.memory_space<semaphore_mem>>)
      }
      %c8_i32_25 = arith.constant 8 : i32
    } else {
    }
    %c0_i32_8 = arith.constant 0 : i32
    %c8_i32 = arith.constant 8 : i32
    %17 = arith.addi %c0_i32_8, %c8_i32 : i32
    %c1_i32_9 = arith.constant 1 : i32
    scf.for %arg7 = %c0_i32_8 to %17 step %c1_i32_9  : i32 {
      %c0_i32_19 = arith.constant 0 : i32
      %c0_i32_20 = arith.constant 0 : i32
      %39 = tpu.memref_slice %arg2[%c0_i32_19, %c0_i32_20] : memref<21x512xf32, #tpu.memory_space<any>> -> memref<1x512xf32, #tpu.memory_space<any>>
      %c0_i32_21 = arith.constant 0 : i32
      %c0_i32_22 = arith.constant 0 : i32
      %40 = tpu.memref_slice %arg5[%9, %c0_i32_21, %c0_i32_22] : memref<2x8x512xf32, #tpu.memory_space<vmem>> -> memref<1x1x512xf32, #tpu.memory_space<vmem>>
      %41 = tpu.memref_squeeze %40 : memref<1x1x512xf32, #tpu.memory_space<vmem>> -> memref<1x512xf32, #tpu.memory_space<vmem>>
      %42 = tpu.memref_slice %arg6[%9] : memref<2x!tpu.dma_semaphore, #tpu.memory_space<semaphore_mem>> -> memref<1x!tpu.dma_semaphore, #tpu.memory_space<semaphore_mem>>
      %43 = tpu.memref_squeeze %42 : memref<1x!tpu.dma_semaphore, #tpu.memory_space<semaphore_mem>> -> memref<!tpu.dma_semaphore, #tpu.memory_space<semaphore_mem>>
      tpu.wait_dma2 semaphore(%43 : memref<!tpu.dma_semaphore, #tpu.memory_space<semaphore_mem>>) src(%39 : memref<1x512xf32, #tpu.memory_space<any>>) dst(%41 : memref<1x512xf32, #tpu.memory_space<vmem>>)
    }
    %18 = arith.index_cast %9 : i32 to index
    %c0 = arith.constant 0 : index
    %c0_10 = arith.constant 0 : index
    %19 = vector.load %arg5[%18, %c0, %c0_10] : memref<2x8x512xf32, #tpu.memory_space<vmem>>, vector<1x8x512xf32>
    %20 = vector.shape_cast %19 : vector<1x8x512xf32> to vector<8x512xf32>
    %c0_11 = arith.constant 0 : index
    %c0_12 = arith.constant 0 : index
    %21 = vector.load %arg3[%c0_11, %c0_12] : memref<512x128xf32, #tpu.memory_space<vmem>>, vector<512x128xf32>
    %cst = arith.constant dense<0.000000e+00> : vector<8x128xf32>
    %22 = tpu.matmul %20, %21, %cst {dimension_numbers = #tpu.dot_dimension_numbers<[1], [0], [0], [1], [0, 0, 1, 1], [], []>} : vector<8x512xf32>, vector<512x128xf32>, vector<8x128xf32> -> vector<8x128xf32>
    %23 = tpu.iota {dimensions = array<i32: 1>} : vector<8x128xi32>
    %c2_i32_13 = arith.constant 2 : i32
    %24 = vector.broadcast %c2_i32_13 : i32 to vector<8x128xi32>
    %25 = arith.cmpi slt, %23, %24 : vector<8x128xi32>
    %cst_14 = arith.constant 0xFF800000 : f32
    %26 = vector.broadcast %cst_14 : f32 to vector<8x128xf32>
    %27 = arith.select %25, %22, %26 : vector<8x128xi1>, vector<8x128xf32>
    %cst_15 = arith.constant dense<0xFF800000> : vector<8xf32>
    %28 = vector.multi_reduction <maximumf>, %27, %cst_15 [1] : vector<8x128xf32> to vector<8xf32>
    %29 = vector.shape_cast %28 : vector<8xf32> to vector<8x1xf32>
    %30 = vector.broadcast %29 : vector<8x1xf32> to vector<8x128xf32>
    %31 = arith.subf %27, %30 : vector<8x128xf32>
    %32 = math.exp %31 : vector<8x128xf32>
    %cst_16 = arith.constant dense<0.000000e+00> : vector<8xf32>
    %33 = vector.multi_reduction <add>, %32, %cst_16 [1] : vector<8x128xf32> to vector<8xf32>
    %34 = vector.shape_cast %33 : vector<8xf32> to vector<8x1xf32>
    %35 = tpu.reciprocal %34 : vector<8x1xf32> -> vector<8x1xf32>
    %36 = vector.broadcast %35 : vector<8x1xf32> to vector<8x128xf32>
    %37 = arith.mulf %32, %36 : vector<8x128xf32>
    %c0_17 = arith.constant 0 : index
    %c0_18 = arith.constant 0 : index
    %38 = vector.load %arg4[%c0_17, %c0_18] : memref<8x128xf32, #tpu.memory_space<vmem>>, vector<8x128xf32>
    tpu.vector_store %arg4[%c0_17, %c0_18], %37 {strides = array<i32>} : memref<8x128xf32, #tpu.memory_space<vmem>>, vector<8x128xf32>,
    return
  }
  func.func @transform_1(%arg0: i32, %arg1: memref<8xi32, #tpu.memory_space<smem>>) -> (i32, i32) {
    %c0_i32 = arith.constant 0 : i32
    %c0_i32_0 = arith.constant 0 : i32
    %c0_i32_1 = arith.constant 0 : i32
    return %c0_i32, %c0_i32_0 : i32, i32
  }
  func.func @transform_2(%arg0: i32, %arg1: memref<8xi32, #tpu.memory_space<smem>>) -> (i32, i32) {
    %c0_i32 = arith.constant 0 : i32
    %c0_i32_0 = arith.constant 0 : i32
    return %arg0, %c0_i32 : i32, i32
  }
}

</mosaic_0001>

<llo_original>
// kernel: outer.1
$region0: #{outer.1}
  #allocation0 [shape = 'u32[]', space=smem, size = 0x4, offset = 0x4, fixed_abs, tag = 'smem constant byte address 0x4 - core index']
  #allocation1 [shape = 'u32[144,128]{1,0:T(1,128)}', space=vmem, size = 0x12000, scoped, tag = 'internal scratch']
  #allocation2 [shape = 'f32[2,8,512]{2,1,0:T(8,128)}', space=vmem, size = 0x8000, scoped, tag = 'scratch operand']
  #allocation3 [shape = 's32[2]{0}', space=sflag, size = 0x8, scoped, tag = 'scratch operand']
  #allocation4 [shape = 's32[1]{0}', space=sflag, size = 0x4, scoped, tag = 'scoped memory for outer.1']
  #allocation5 [shape = 'u8[512]{0}', space=smem, size = 0x200, scoped, tag = 'prefetched SMEM operand 0']
  #allocation8 [shape = 's32[]', space=sflag, size = 0x4, offset = 0, fixed_abs, tag = 'sflag constant byte address 0x0 - dummy sync flag']
  #allocation9 [shape = 's32[]', space=sflag, size = 0x4, offset = 0, fixed_abs, tag = 'sflag constant byte address 0x0 - dummy sync flag']
  %s0 = inlined_call_operand.hbm [shape: s32[8], index: 0, kind: input, shape index: {}]
  %s1 = inlined_call_operand.hbm [shape: f32[21,512], index: 1, kind: input, shape index: {}]
  %s2 = inlined_call_operand.hbm [shape: f32[512,128], index: 2, kind: input, shape index: {}]
  %s3 = inlined_call_operand.vmem [shape: f32[8,128], index: 3, kind: output, shape index: {}]
  %s4 = sld [smem:[#allocation0]]
  $region47: #{outer.1} parent=0
    _
  %s6 = ssub.s32 1, %s4
  %s7 = scalar_select 0, %s6, %s4
  %9 = dma.hbm_to_smem %s0, 16, [#allocation5], [#allocation4]
  %10 = dma.done [#allocation4], 16
  %11 = sfence
  $region1: #{outer.1} parent=0
    #allocation6 [shape = 'u8[262144]{0}', space=vmem, size = 0x40000, scoped, tag = 'input window, operand 2, single buffered']
    #allocation7 [shape = 's32[1]{0}', space=sflag, size = 0x4, scoped, tag = 'scoped memory for outer.1']
    %12 = vsyncpa [#allocation7], 0
    // Predicated region
    $region2: #{outer.1} parent=1 // pred_check
      _
    $region3: #{outer.1} parent=1 // pred_check_branch
      %14 = sbr.rel (0) target = $region5
    $region4: #{outer.1} parent=1 // pred_region
      %s16 = ssub.s32 8192, 8192
      %17 = vsyncadd [#allocation7], %s16
      %s18 = sshll.u32 [#allocation6], 4
      %s19 = int_to_ptr.vmem [resolvable:$true] %s18
      %24 = dma.hbm_to_vmem [thread:$0]  %s2, 8192, %s19, [#allocation7], 128, 128, 8
    $region5: #{outer.1} parent=1 // pred_fallthru
      _
    // Predicated region
    $region6: #{outer.1} parent=1 // pred_check
      _
    $region7: #{outer.1} parent=1 // pred_check_branch
      %26 = sbr.rel (0) target = $region9
    $region8: #{outer.1} parent=1 // pred_region
      %27 = dma.done [#allocation7], 8192
    $region9: #{outer.1} parent=1 // pred_fallthru
      _
    %s28 = ssub.s32 0, 0
    %s29 = ssub.s32 0, 0
    %p30 = scmp.ne.s32.totalorder 0, 0
    %p31 = scmp.lt.s32.totalorder 0, 0
    %p32 = pnand %p31, %p30
    %p33 = pneg %p32
    %s34 = sadd.s32 0, 2
    %s35 = scalar_select %p33, %s34, 0
    %p36 = scmp.eq.s32.totalorder 0, 0
    // Predicated region
    $region10: #{outer.1} parent=1 // pred_check
      %p37 = pneg %p36
    $region11: #{outer.1} parent=1 // pred_check_branch
      %39 = sbr.rel (%p37) target = $region13
    $region12: #{outer.1} parent=1 // pred_region
      loop: start=0, step=1, limit=8
      $region14: #{outer.1} parent=12 // loop_pre_header
        _
      $region15: #{outer.1} parent=12 // loop_header
        %s41 = sphi 0, %s45
        %p42 = scmp.ge.s32.totalorder %s41, 8
      $region16: #{outer.1} parent=12 // loop_header_branch
        %44 = sbr.rel (%p42) target = $region20
      $region17: #{outer.1} parent=12 // loop_body
        %s46 = sld [smem:[#allocation5 + %s41]]
        %s47 = sshrl.u32 %s46, 3
        %s48 = sand.u32 %s46, 7
        %s49 = smul.u32 %s47, 32
        %s50 = sadd.s32 %s48, %s49
        %s51 = smul.addr %s50, 16
        %s52 = scalar_lea.hbm %s1, %s51
        %s53 = sshrl.u32 %s41, 3
        %s54 = sand.u32 %s41, 7
        %s55 = smul.u32 %s53, 32
        %s56 = sadd.s32 %s54, %s55
        %s57 = scalar_lea.vmem [#allocation2], %s56
        %s59 = sshll.u32 %s57, 4
        %s60 = int_to_ptr.vmem [resolvable:$true] %s59
        %62 = dma.hbm_to_vmem [thread:$0]  %s52, 64, %s60, [#allocation3], 128, 128, 1
      $region18: #{outer.1} parent=12 // loop_footer
        %s45 = sadd.s32 1, %s41
      $region19: #{outer.1} parent=12 // loop_footer_branch
        %40 = sbr.rel target = $region15
      $region20: #{outer.1} parent=12 // loop_exit
        _
    $region13: #{outer.1} parent=1 // pred_fallthru
      _
    %s63 = sadd.s32 0, 1
    %p64 = scmp.lt.s32.totalorder %s63, 1
    // Predicated region
    $region21: #{outer.1} parent=1 // pred_check
      %p65 = pneg %p64
    $region22: #{outer.1} parent=1 // pred_check_branch
      %67 = sbr.rel (%p65) target = $region24
    $region23: #{outer.1} parent=1 // pred_region
      %s68 = ssub.s32 1, %s35
      %s69 = smul.u32 %s63, 8
      loop: start=0, step=1, limit=8
      $region25: #{outer.1} parent=23 // loop_pre_header
        _
      $region26: #{outer.1} parent=23 // loop_header
        %s71 = sphi 0, %s75
        %p72 = scmp.ge.s32.totalorder %s71, 8
      $region27: #{outer.1} parent=23 // loop_header_branch
        %74 = sbr.rel (%p72) target = $region31
      $region28: #{outer.1} parent=23 // loop_body
        %s76 = sadd.s32 %s69, %s71
        %s77 = sld [smem:[#allocation5 + %s76]]
        %s78 = sshrl.u32 %s77, 3
        %s79 = sand.u32 %s77, 7
        %s80 = smul.u32 %s78, 32
        %s81 = sadd.s32 %s79, %s80
        %s82 = smul.addr %s81, 16
        %s83 = scalar_lea.hbm %s1, %s82
        %s84 = sshrl.u32 %s71, 3
        %s85 = sand.u32 %s71, 7
        %s86 = smul.u32 %s84, 32
        %s87 = sadd.s32 %s85, %s86
        %s88 = smul.u32 %s68, 32
        %s89 = sadd.s32 %s87, %s88
        %s90 = scalar_lea.vmem [#allocation2], %s89
        %s91 = scalar_lea.sflag [#allocation3], %s68
        %s93 = sshll.u32 %s90, 4
        %s94 = int_to_ptr.vmem [resolvable:$true] %s93
        %96 = dma.hbm_to_vmem [thread:$0]  %s83, 64, %s94, %s91, 128, 128, 1
      $region29: #{outer.1} parent=23 // loop_footer
        %s75 = sadd.s32 1, %s71
      $region30: #{outer.1} parent=23 // loop_footer_branch
        %70 = sbr.rel target = $region26
      $region31: #{outer.1} parent=23 // loop_exit
        _
    $region24: #{outer.1} parent=1 // pred_fallthru
      _
    loop: start=0, step=1, limit=8
    $region32: #{outer.1} parent=1 // loop_pre_header
      _
    $region33: #{outer.1} parent=1 // loop_header
      %s98 = sphi 0, %s102
      %p99 = scmp.ge.s32.totalorder %s98, 8
    $region34: #{outer.1} parent=1 // loop_header_branch
      %101 = sbr.rel (%p99) target = $region38
    $region35: #{outer.1} parent=1 // loop_body
      %s103 = scalar_lea.sflag [#allocation3], %s35
      %s104 = smul.u32 1, 4
      %s105 = sshll.u32 %s104, 4
      %106 = dma.done %s103, %s105
    $region36: #{outer.1} parent=1 // loop_footer
      %s102 = sadd.s32 1, %s98
    $region37: #{outer.1} parent=1 // loop_footer_branch
      %97 = sbr.rel target = $region33
    $region38: #{outer.1} parent=1 // loop_exit
      _
    %s107 = smul.u32 %s35, 4
    %s108 = smul.addr %s107, 8
    %s109 = scalar_lea.vmem [#allocation2], %s108
    %v110 = vld [vmem:[%s109] sm:$0xff]
    %v111 = vld [vmem:[%s109 + $0x8] sm:$0xff]
    %v112 = vld [vmem:[%s109 + $0x10] sm:$0xff]
    %v113 = vld [vmem:[%s109 + $0x18] sm:$0xff]
    %v114 = vld [vmem:[#allocation6] sm:$0xff]
    %v115 = vld [vmem:[#allocation6 + $0x8] sm:$0xff]
    %v116 = vld [vmem:[#allocation6 + $0x10] sm:$0xff]
    %v117 = vld [vmem:[#allocation6 + $0x18] sm:$0xff]
    %v118 = vld [vmem:[#allocation6 + $0x20] sm:$0xff]
    %v119 = vld [vmem:[#allocation6 + $0x28] sm:$0xff]
    %v120 = vld [vmem:[#allocation6 + $0x30] sm:$0xff]
    %v121 = vld [vmem:[#allocation6 + $0x38] sm:$0xff]
    %v122 = vld [vmem:[#allocation6 + $0x40] sm:$0xff]
    %v123 = vld [vmem:[#allocation6 + $0x48] sm:$0xff]
    %v124 = vld [vmem:[#allocation6 + $0x50] sm:$0xff]
    %v125 = vld [vmem:[#allocation6 + $0x58] sm:$0xff]
    %v126 = vld [vmem:[#allocation6 + $0x60] sm:$0xff]
    %v127 = vld [vmem:[#allocation6 + $0x68] sm:$0xff]
    %v128 = vld [vmem:[#allocation6 + $0x70] sm:$0xff]
    %v129 = vld [vmem:[#allocation6 + $0x78] sm:$0xff]
    %v130 = vld [vmem:[#allocation6 + $0x80] sm:$0xff]
    %v131 = vld [vmem:[#allocation6 + $0x88] sm:$0xff]
    %v132 = vld [vmem:[#allocation6 + $0x90] sm:$0xff]
    %v133 = vld [vmem:[#allocation6 + $0x98] sm:$0xff]
    %v134 = vld [vmem:[#allocation6 + $0xa0] sm:$0xff]
    %v135 = vld [vmem:[#allocation6 + $0xa8] sm:$0xff]
    %v136 = vld [vmem:[#allocation6 + $0xb0] sm:$0xff]
    %v137 = vld [vmem:[#allocation6 + $0xb8] sm:$0xff]
    %v138 = vld [vmem:[#allocation6 + $0xc0] sm:$0xff]
    %v139 = vld [vmem:[#allocation6 + $0xc8] sm:$0xff]
    %v140 = vld [vmem:[#allocation6 + $0xd0] sm:$0xff]
    %v141 = vld [vmem:[#allocation6 + $0xd8] sm:$0xff]
    %v142 = vld [vmem:[#allocation6 + $0xe0] sm:$0xff]
    %v143 = vld [vmem:[#allocation6 + $0xe8] sm:$0xff]
    %v144 = vld [vmem:[#allocation6 + $0xf0] sm:$0xff]
    %v145 = vld [vmem:[#allocation6 + $0xf8] sm:$0xff]
    %v146 = vld [vmem:[#allocation6 + $0x100] sm:$0xff]
    %v147 = vld [vmem:[#allocation6 + $0x108] sm:$0xff]
    %v148 = vld [vmem:[#allocation6 + $0x110] sm:$0xff]
    %v149 = vld [vmem:[#allocation6 + $0x118] sm:$0xff]
    %v150 = vld [vmem:[#allocation6 + $0x120] sm:$0xff]
    %v151 = vld [vmem:[#allocation6 + $0x128] sm:$0xff]
    %v152 = vld [vmem:[#allocation6 + $0x130] sm:$0xff]
    %v153 = vld [vmem:[#allocation6 + $0x138] sm:$0xff]
    %v154 = vld [vmem:[#allocation6 + $0x140] sm:$0xff]
    %v155 = vld [vmem:[#allocation6 + $0x148] sm:$0xff]
    %v156 = vld [vmem:[#allocation6 + $0x150] sm:$0xff]
    %v157 = vld [vmem:[#allocation6 + $0x158] sm:$0xff]
    %v158 = vld [vmem:[#allocation6 + $0x160] sm:$0xff]
    %v159 = vld [vmem:[#allocation6 + $0x168] sm:$0xff]
    %v160 = vld [vmem:[#allocation6 + $0x170] sm:$0xff]
    %v161 = vld [vmem:[#allocation6 + $0x178] sm:$0xff]
    %v162 = vld [vmem:[#allocation6 + $0x180] sm:$0xff]
    %v163 = vld [vmem:[#allocation6 + $0x188] sm:$0xff]
    %v164 = vld [vmem:[#allocation6 + $0x190] sm:$0xff]
    %v165 = vld [vmem:[#allocation6 + $0x198] sm:$0xff]
    %v166 = vld [vmem:[#allocation6 + $0x1a0] sm:$0xff]
    %v167 = vld [vmem:[#allocation6 + $0x1a8] sm:$0xff]
    %v168 = vld [vmem:[#allocation6 + $0x1b0] sm:$0xff]
    %v169 = vld [vmem:[#allocation6 + $0x1b8] sm:$0xff]
    %v170 = vld [vmem:[#allocation6 + $0x1c0] sm:$0xff]
    %v171 = vld [vmem:[#allocation6 + $0x1c8] sm:$0xff]
    %v172 = vld [vmem:[#allocation6 + $0x1d0] sm:$0xff]
    %v173 = vld [vmem:[#allocation6 + $0x1d8] sm:$0xff]
    %v174 = vld [vmem:[#allocation6 + $0x1e0] sm:$0xff]
    %v175 = vld [vmem:[#allocation6 + $0x1e8] sm:$0xff]
    %v176 = vld [vmem:[#allocation6 + $0x1f0] sm:$0xff]
    %v177 = vld [vmem:[#allocation6 + $0x1f8] sm:$0xff]
    %178 = vmatprep.subr.mxu0 0.0
    %179 = vmatpush1.msra.mxu0 %v114
    %180 = vmatprep.subr.mxu0 0.0
    %181 = vmatpush1.msra.mxu0 %v115
    %182 = vmatprep.subr.mxu0 0.0
    %183 = vmatpush1.msra.mxu0 %v116
    %184 = vmatprep.subr.mxu0 0.0
    %185 = vmatpush1.msra.mxu0 %v117
    %186 = vmatprep.subr.mxu0 0.0
    %187 = vmatpush1.msra.mxu0 %v118
    %188 = vmatprep.subr.mxu0 0.0
    %189 = vmatpush1.msra.mxu0 %v119
    %190 = vmatprep.subr.mxu0 0.0
    %191 = vmatpush1.msra.mxu0 %v120
    %192 = vmatprep.subr.mxu0 0.0
    %193 = vmatpush1.msra.mxu0 %v121
    %194 = vmatprep.subr.mxu0 0.0
    %195 = vmatpush1.msra.mxu0 %v122
    %196 = vmatprep.subr.mxu0 0.0
    %197 = vmatpush1.msra.mxu0 %v123
    %198 = vmatprep.subr.mxu0 0.0
    %199 = vmatpush1.msra.mxu0 %v124
    %200 = vmatprep.subr.mxu0 0.0
    %201 = vmatpush1.msra.mxu0 %v125
    %202 = vmatprep.subr.mxu0 0.0
    %203 = vmatpush1.msra.mxu0 %v126
    %204 = vmatprep.subr.mxu0 0.0
    %205 = vmatpush1.msra.mxu0 %v127
    %206 = vmatprep.subr.mxu0 0.0
    %207 = vmatpush1.msra.mxu0 %v128
    %208 = vmatprep.subr.mxu0 0.0
    %209 = vmatpush1.msra.mxu0 %v129
    %210 = vmatprep.subr.mxu0 0.0
    %211 = vmatpush1.msra.mxu0 %v130
    %212 = vmatprep.subr.mxu0 0.0
    %213 = vmatpush1.msra.mxu0 %v131
    %214 = vmatprep.subr.mxu0 0.0
    %215 = vmatpush1.msra.mxu0 %v132
    %216 = vmatprep.subr.mxu0 0.0
    %217 = vmatpush1.msra.mxu0 %v133
    %218 = vmatprep.subr.mxu0 0.0
    %219 = vmatpush1.msra.mxu0 %v134
    %220 = vmatprep.subr.mxu0 0.0
    %221 = vmatpush1.msra.mxu0 %v135
    %222 = vmatprep.subr.mxu0 0.0
    %223 = vmatpush1.msra.mxu0 %v136
    %224 = vmatprep.subr.mxu0 0.0
    %225 = vmatpush1.msra.mxu0 %v137
    %226 = vmatprep.subr.mxu0 0.0
    %227 = vmatpush1.msra.mxu0 %v138
    %228 = vmatprep.subr.mxu0 0.0
    %229 = vmatpush1.msra.mxu0 %v139
    %230 = vmatprep.subr.mxu0 0.0
    %231 = vmatpush1.msra.mxu0 %v140
    %232 = vmatprep.subr.mxu0 0.0
    %233 = vmatpush1.msra.mxu0 %v141
    %234 = vmatprep.subr.mxu0 0.0
    %235 = vmatpush1.msra.mxu0 %v142
    %236 = vmatprep.subr.mxu0 0.0
    %237 = vmatpush1.msra.mxu0 %v143
    %238 = vmatprep.subr.mxu0 0.0
    %239 = vmatpush1.msra.mxu0 %v144
    %240 = vmatprep.subr.mxu0 0.0
    %241 = vmatpush1.msra.mxu0 %v145
    %242 = vmatprep.mubr.f32.mxu0 %v111
    %243 = vmatmul.mubr.f32.gmra.mrb[0].mxu0 %v110
    %v244 = vpop.f32.mrb[0].mxu0
    %v245 = vadd.f32 0.0, %v244
    %v246 = vpop.f32.mrb[0].mxu0
    %247 = vdwg.mxu0
    %248 = vmatprep.subr.mxu0 0.0
    %249 = vmatpush1.msra.mxu0 %v146
    %250 = vmatprep.subr.mxu0 0.0
    %251 = vmatpush1.msra.mxu0 %v147
    %252 = vmatprep.subr.mxu0 0.0
    %253 = vmatpush1.msra.mxu0 %v148
    %254 = vmatprep.subr.mxu0 0.0
    %255 = vmatpush1.msra.mxu0 %v149
    %256 = vmatprep.subr.mxu0 0.0
    %257 = vmatpush1.msra.mxu0 %v150
    %258 = vmatprep.subr.mxu0 0.0
    %259 = vmatpush1.msra.mxu0 %v151
    %260 = vmatprep.subr.mxu0 0.0
    %261 = vmatpush1.msra.mxu0 %v152
    %262 = vmatprep.subr.mxu0 0.0
    %263 = vmatpush1.msra.mxu0 %v153
    %264 = vmatprep.subr.mxu0 0.0
    %265 = vmatpush1.msra.mxu0 %v154
    %266 = vmatprep.subr.mxu0 0.0
    %267 = vmatpush1.msra.mxu0 %v155
    %268 = vmatprep.subr.mxu0 0.0
    %269 = vmatpush1.msra.mxu0 %v156
    %270 = vmatprep.subr.mxu0 0.0
    %271 = vmatpush1.msra.mxu0 %v157
    %272 = vmatprep.subr.mxu0 0.0
    %273 = vmatpush1.msra.mxu0 %v158
    %274 = vmatprep.subr.mxu0 0.0
    %275 = vmatpush1.msra.mxu0 %v159
    %276 = vmatprep.subr.mxu0 0.0
    %277 = vmatpush1.msra.mxu0 %v160
    %278 = vmatprep.subr.mxu0 0.0
    %279 = vmatpush1.msra.mxu0 %v161
    %280 = vmatprep.subr.mxu0 0.0
    %281 = vmatpush1.msra.mxu0 %v162
    %282 = vmatprep.subr.mxu0 0.0
    %283 = vmatpush1.msra.mxu0 %v163
    %284 = vmatprep.subr.mxu0 0.0
    %285 = vmatpush1.msra.mxu0 %v164
    %286 = vmatprep.subr.mxu0 0.0
    %287 = vmatpush1.msra.mxu0 %v165
    %288 = vmatprep.subr.mxu0 0.0
    %289 = vmatpush1.msra.mxu0 %v166
    %290 = vmatprep.subr.mxu0 0.0
    %291 = vmatpush1.msra.mxu0 %v167
    %292 = vmatprep.subr.mxu0 0.0
    %293 = vmatpush1.msra.mxu0 %v168
    %294 = vmatprep.subr.mxu0 0.0
    %295 = vmatpush1.msra.mxu0 %v169
    %296 = vmatprep.subr.mxu0 0.0
    %297 = vmatpush1.msra.mxu0 %v170
    %298 = vmatprep.subr.mxu0 0.0
    %299 = vmatpush1.msra.mxu0 %v171
    %300 = vmatprep.subr.mxu0 0.0
    %301 = vmatpush1.msra.mxu0 %v172
    %302 = vmatprep.subr.mxu0 0.0
    %303 = vmatpush1.msra.mxu0 %v173
    %304 = vmatprep.subr.mxu0 0.0
    %305 = vmatpush1.msra.mxu0 %v174
    %306 = vmatprep.subr.mxu0 0.0
    %307 = vmatpush1.msra.mxu0 %v175
    %308 = vmatprep.subr.mxu0 0.0
    %309 = vmatpush1.msra.mxu0 %v176
    %310 = vmatprep.subr.mxu0 0.0
    %311 = vmatpush1.msra.mxu0 %v177
    %312 = vmatprep.mubr.f32.mxu0 %v113
    %313 = vmatmul.mubr.f32.gmra.mrb[0].mxu0 %v112
    %v314 = vpop.f32.mrb[0].mxu0
    %v315 = vadd.f32 %v245, %v314
    %v316 = vpop.f32.mrb[0].mxu0
    %317 = vdwg.mxu0
    %v318 = vlaneseq
    %v319 = vand.u32 %v318, 127
    %vm320 = vcmp.lt.s32.totalorder %v319, 2
    %v321 = vsel %vm320, %v315, -inf
    %322 = vmax.xlane.f32.xlu0 %v321
    %v323 = vpop.xlane.xlu0 %322
    %v324 = vsub.f32 %v321, %v323
    %v325 = vmul.f32 %v324, 1.442695
    %v326 = vpow.pop %v325
    %327 = vadd.xlane.f32.xlu0 %v326
    %v328 = vpop.xlane.xlu0 %327
    %v329 = vrcp.pop %v328
    %v330 = vmul.f32 %v326, %v329
    %331 = vst [vmem:[%s3] sm:$0xff] %v330
    // Predicated region
    $region39: #{outer.1} parent=1 // pred_check
      _
    $region40: #{outer.1} parent=1 // pred_check_branch
      %333 = sbr.rel (0) target = $region42
    $region41: #{outer.1} parent=1 // pred_region
      _
    $region42: #{outer.1} parent=1 // pred_fallthru
      _
    // Predicated region
    $region43: #{outer.1} parent=1 // pred_check
      _
    $region44: #{outer.1} parent=1 // pred_check_branch
      %335 = sbr.rel (0) target = $region46
    $region45: #{outer.1} parent=1 // pred_region
      _
    $region46: #{outer.1} parent=1 // pred_fallthru
      _
    %336 = vsyncpa [#allocation7], 1
  %337 = vsyncmov [#allocation3]
  %s338 = vpop.sfrf %337
  %p339 = scmp.eq.s32.totalorder %s338, 0
  %p340 = pneg %p339
  %342 = shalt.err (%p340)
  %s343 = scalar_lea.sflag [#allocation3], 1
  %344 = vsyncmov %s343
  %s345 = vpop.sfrf %344
  %p346 = scmp.eq.s32.totalorder %s345, 0
  %p347 = pneg %p346
  %349 = shalt.err (%p347)

</llo_original>
